<compile_context>
chip_gen: v6e
topology: v6e:2x2x1
jax: 0.10.0
libtpu: 0.0.40
codegen_flags: <defaults>
</compile_context>

<pallas_src>
import functools

import jax
import jax.numpy as jnp
from jax import lax
from jax.experimental import pallas as pl
from jax.experimental.pallas import tpu as pltpu


# ---------------------------------------------------------------------------
# helpers
# ---------------------------------------------------------------------------
def _round_up(x, m):
    return ((x + m - 1) // m) * m


def _vmem_capacity_bytes():
    try:
        return int(pltpu.get_tpu_info().vmem_capacity_bytes)
    except Exception:
        return 64 * 1024 * 1024  # conservative: v7x physical per-TC VMEM


def _vmem_limit_bytes():
    # Explicit scoped-VMEM limit: generous but safe on v5e/v6e (128 MiB
    # physical) and v7x (64 MiB physical).
    return min(48 * 1024 * 1024, (3 * _vmem_capacity_bytes()) // 4)


def _choose_edge_tile(num_edges, per_edge_bytes, *, max_tile=2048,
                      vmem_budget_bytes=8 * 1024 * 1024, min_blocks=2):
    """Edge-tile size: multiple of 128 lanes, capped (tiles >=512 already hit
    ~85% of HBM roofline), shrunk to fit a conservative per-tile VMEM budget
    (double-buffered inputs + f32 intermediates, lane padding included), and
    small enough to leave >= min_blocks grid steps (megacore sharding on v7x
    and pipeline overlap on all generations)."""
    if num_edges <= 128:
        return max(num_edges, 1)
    te = max_tile
    while te > 128 and te * per_edge_bytes > vmem_budget_bytes:
        te //= 2
    cap_for_blocks = max(128, (_round_up(num_edges, 128) // min_blocks) // 128 * 128)
    return max(128, min(te, cap_for_blocks))


# ---------------------------------------------------------------------------
# Kernel 1: fully fused gather + MLP (small node tables, edges-in-lanes)
# ---------------------------------------------------------------------------
def _fused_gather_mlp_kernel(row_ref, col_ref, hu_ref, hm_ref, b1_ref, w2_ref,
                             b2_ref, o_ref):
    # row_ref / col_ref : [1, TE] int32   edge endpoints for this tile
    # hu_ref            : [H, Upad] f32   W1_user  @ z_user.T  (lin1 folded in)
    # hm_ref            : [H, Mpad] f32   W1_movie @ z_movie.T
    # b1_ref            : [H, 1]   f32
    # w2_ref            : [H, 1]   f32
    # b2_ref            : [1]      f32 (SMEM scalar)
    # o_ref             : [1, TE]  f32 (lane-dense output block)
    n_user = hu_ref.shape[1]
    n_movie = hm_ref.shape[1]
    te = row_ref.shape[1]

    # Gather as a one-hot MXU matmul (guaranteed lowering; wrapper gates this
    # path to small node tables).  Result columns are edges -> lane-dense.
    oh_u = (row_ref[...] ==
            lax.broadcasted_iota(jnp.int32, (n_user, te), 0)).astype(jnp.float32)
    oh_m = (col_ref[...] ==
            lax.broadcasted_iota(jnp.int32, (n_movie, te), 0)).astype(jnp.float32)
    h = jnp.dot(hu_ref[...], oh_u, preferred_element_type=jnp.float32)
    h = h + jnp.dot(hm_ref[...], oh_m, preferred_element_type=jnp.float32)
    h = jnp.maximum(h + b1_ref[...], 0.0)                       # [H, TE] relu

    # lin2 (out_features == 1): VPU multiply + sublane reduce -> already a
    # lane-dense [1, TE] row; no relayout, unmasked vst.
    out = jnp.sum(h * w2_ref[...], axis=0, keepdims=True) + b2_ref[0]
    o_ref[...] = out.astype(o_ref.dtype)


def _edge_decoder_fused(row, col, z_user, z_movie, w1, b1, w2, b2):
    """Fused path: per-edge HBM traffic is 2 int32 indices + 1 f32 output."""
    U, H = z_user.shape
    M = z_movie.shape[0]
    E = row.shape[0]

    # Fold lin1 into the (tiny) node tables once: h.T = W1u@zu.T + W1m@zm.T + b1.
    w1f = w1.astype(jnp.float32)
    hu_tab = jnp.dot(w1f[:, :H], z_user.astype(jnp.float32).T)   # [H, U]
    hm_tab = jnp.dot(w1f[:, H:], z_movie.astype(jnp.float32).T)  # [H, M]
    u_pad = _round_up(U, 8)
    m_pad = _round_up(M, 8)
    hu_tab = jnp.pad(hu_tab, ((0, 0), (0, u_pad - U)))           # padded node
    hm_tab = jnp.pad(hm_tab, ((0, 0), (0, m_pad - M)))           # cols unused

    row2 = row.reshape(1, E).astype(jnp.int32)
    col2 = col.reshape(1, E).astype(jnp.int32)

    per_edge_bytes = (2 * 2 * 4                  # double-buffered index tiles
                      + (u_pad + m_pad) * 4      # transient one-hot columns
                      + 3 * H * 4)               # hu, hm, h f32 columns
    te = _choose_edge_tile(E, per_edge_bytes, max_tile=1024)
    grid = (pl.cdiv(E, te),)

    out = pl.pallas_call(
        _fused_gather_mlp_kernel,
        out_shape=jax.ShapeDtypeStruct((1, E), jnp.float32),
        grid=grid,
        in_specs=[
            pl.BlockSpec((1, te), lambda i: (0, i)),        # row idx tile
            pl.BlockSpec((1, te), lambda i: (0, i)),        # col idx tile
            pl.BlockSpec((H, u_pad), lambda i: (0, 0)),     # user table (resident)
            pl.BlockSpec((H, m_pad), lambda i: (0, 0)),     # movie table (resident)
            pl.BlockSpec((H, 1), lambda i: (0, 0)),         # b1 (resident)
            pl.BlockSpec((H, 1), lambda i: (0, 0)),         # w2 col (resident)
            pl.BlockSpec(memory_space=pltpu.SMEM),          # b2 scalar
        ],
        out_specs=pl.BlockSpec((1, te), lambda i: (0, i)),
        compiler_params=pltpu.CompilerParams(
            dimension_semantics=("parallel",),
            vmem_limit_bytes=_vmem_limit_bytes()),
    )(row2, col2, hu_tab, hm_tab,
      b1.reshape(H, 1).astype(jnp.float32),
      w2.reshape(H, 1).astype(jnp.float32),
      b2.reshape(1).astype(jnp.float32))
    return out.reshape(-1)


# ---------------------------------------------------------------------------
# Kernel 2: large-table fallback (XLA row-gather feeding the MLP kernel)
# ---------------------------------------------------------------------------
def _gathered_mlp_kernel(zu_ref, zm_ref, w1u_ref, w1m_ref, b1_ref, w2_ref,
                         b2_ref, o_ref):
    # zu_ref/zm_ref  : [TE, H]  gathered embeddings (f32 or bf16)
    # w1u_ref/w1m_ref: [H, H]   lin1 weight halves in x@W layout (resident)
    # b1_ref/w2_ref  : [1, H] f32 ; b2_ref: [1] f32 (SMEM) ; o_ref: [1, TE] f32
    # lin1 on the *virtual* concat [zu || zm]; the concat never materializes.
    h = jnp.dot(zu_ref[...], w1u_ref[...], preferred_element_type=jnp.float32)
    h = h + jnp.dot(zm_ref[...], w1m_ref[...], preferred_element_type=jnp.float32)
    h = jnp.maximum(h + b1_ref[...], 0.0)                        # [TE, H] f32
    out = jnp.sum(h * w2_ref[...], axis=-1) + b2_ref[0]          # [TE]
    o_ref[...] = out.reshape(o_ref.shape).astype(o_ref.dtype)    # lane-dense


def _edge_decoder_gathered(row, col, z_user, z_movie, w1, b1, w2, b2,
                           compute_dtype=None):
    H = z_user.shape[1]
    E = row.shape[0]
    in_dtype = z_user.dtype if compute_dtype is None else compute_dtype

    # XLA row-gather (contiguous rows -> efficient DMA pattern). Casting the
    # node tables first means the gathered [E, H] streams are written/read at
    # in_dtype (bf16 halves the dominant HBM traffic on v6e/v7x).
    zu = jnp.take(z_user.astype(in_dtype), row, axis=0)          # [E, H]
    zm = jnp.take(z_movie.astype(in_dtype), col, axis=0)         # [E, H]
    w1u = jnp.transpose(w1[:, :H]).astype(in_dtype)              # [H, H]
    w1m = jnp.transpose(w1[:, H:]).astype(in_dtype)              # [H, H]

    itemsize = jnp.dtype(in_dtype).itemsize
    lanes = max(H, 128)          # a [TE, H] tile occupies max(H,128) lanes
    per_edge_bytes = 2 * 2 * lanes * itemsize + lanes * 4        # zu/zm x2buf + f32 h
    te = _choose_edge_tile(E, per_edge_bytes, max_tile=2048)
    grid = (pl.cdiv(E, te),)

    out = pl.pallas_call(
        _gathered_mlp_kernel,
        out_shape=jax.ShapeDtypeStruct((1, E), jnp.float32),
        grid=grid,
        in_specs=[
            pl.BlockSpec((te, H), lambda i: (i, 0)),    # zu tile (pipelined)
            pl.BlockSpec((te, H), lambda i: (i, 0)),    # zm tile (pipelined)
            pl.BlockSpec((H, H), lambda i: (0, 0)),     # W1_user  (resident)
            pl.BlockSpec((H, H), lambda i: (0, 0)),     # W1_movie (resident)
            pl.BlockSpec((1, H), lambda i: (0, 0)),     # b1       (resident)
            pl.BlockSpec((1, H), lambda i: (0, 0)),     # w2 row   (resident)
            pl.BlockSpec(memory_space=pltpu.SMEM),      # b2 scalar
        ],
        out_specs=pl.BlockSpec((1, te), lambda i: (0, i)),
        compiler_params=pltpu.CompilerParams(
            dimension_semantics=("parallel",),
            vmem_limit_bytes=_vmem_limit_bytes()),
    )(zu, zm, w1u, w1m,
      b1.reshape(1, H).astype(jnp.float32),
      w2.reshape(1, H).astype(jnp.float32),
      b2.reshape(1).astype(jnp.float32))
    return out.reshape(-1)


# ---------------------------------------------------------------------------
# public forward
# ---------------------------------------------------------------------------
# Above this many node rows the one-hot gather matmul would dominate the
# (otherwise HBM-bound) kernel on v5e/v6e, so fall back to the XLA gather.
_MAX_ONEHOT_NODES = 512


def edge_decoder_forward(z_user, z_movie, edge_label_index, params,
                         compute_dtype=None, force_path=None):
    """EdgeDecoder.forward.

    params: torch-layout {'w1': [H, 2H], 'b1': [H], 'w2': [1, H], 'b2': [1]}.
    compute_dtype: e.g. jnp.bfloat16 halves the gathered-stream HBM traffic on
      the fallback path (recommended on v6e/v7x); the fused path's HBM traffic
      is indices + output only, so it always runs f32.
    force_path: None | 'fused' | 'gathered' (testing hook).
    """
    row, col = edge_label_index
    w1, b1, w2, b2 = params["w1"], params["b1"], params["w2"], params["b2"]
    U, H = z_user.shape
    M = z_movie.shape[0]

    tables_bytes = (_round_up(U, 8) + _round_up(M, 8)) * H * 4
    fused_ok = (max(U, M) <= _MAX_ONEHOT_NODES
                and tables_bytes < _vmem_capacity_bytes() // 8)
    path = force_path or ("fused" if fused_ok else "gathered")
    if path == "fused":
        return _edge_decoder_fused(row, col, z_user, z_movie, w1, b1, w2, b2)
    # TODO(synk): for very large node tables, a per-row DMA gather
    # (memory_space=pl.ANY + make_async_copy driven by scalar-prefetched
    # indices) would remove this remaining XLA gather round-trip as well.
    return _edge_decoder_gathered(row, col, z_user, z_movie, w1, b1, w2, b2,
                                  compute_dtype=compute_dtype)


# ---------------------------------------------------------------------------
# demo / correctness check
# ---------------------------------------------------------------------------
if __name__ == "__main__":
    key = jax.random.PRNGKey(0)
    k_user, k_movie, k_row, k_col, k_w1, k_b1, k_w2, k_b2 = jax.random.split(key, 8)

    hidden = 32
    num_users = 16
    num_movies = 24
    num_edges = 64

    z_user = jax.random.normal(k_user, (num_users, hidden), jnp.float32)
    z_movie = jax.random.normal(k_movie, (num_movies, hidden), jnp.float32)
    row = jax.random.randint(k_row, (num_edges,), 0, num_users)
    col = jax.random.randint(k_col, (num_edges,), 0, num_movies)
    edge_label_index = (row, col)

    params = {
        "w1": jax.random.normal(k_w1, (hidden, 2 * hidden), jnp.float32) * 0.05,
        "b1": jax.random.normal(k_b1, (hidden,), jnp.float32) * 0.05,
        "w2": jax.random.normal(k_w2, (1, hidden), jnp.float32) * 0.05,
        "b2": jax.random.normal(k_b2, (1,), jnp.float32) * 0.05,
    }

    # plain-JAX reference of the original PyTorch forward
    z_cat = jnp.concatenate([z_user[row], z_movie[col]], axis=-1)
    h_ref = jnp.maximum(z_cat @ params["w1"].T + params["b1"], 0.0)
    ref = (h_ref @ params["w2"].T + params["b2"]).reshape(-1)

    # 1) default dispatch: small tables -> fully fused gather+MLP kernel
    out_fused = jax.block_until_ready(
        jax.jit(edge_decoder_forward)(z_user, z_movie, edge_label_index, params))
    assert out_fused.shape == (num_edges,)
    assert jnp.allclose(out_fused, ref, atol=1e-4, rtol=1e-4), \
        float(jnp.max(jnp.abs(out_fused - ref)))

    # 2) large-table fallback path (XLA row-gather + MLP kernel), f32
    out_gath = jax.block_until_ready(
        jax.jit(functools.partial(edge_decoder_forward, force_path="gathered"))(
            z_user, z_movie, edge_label_index, params))
    assert jnp.allclose(out_gath, ref, atol=1e-4, rtol=1e-4), \
        float(jnp.max(jnp.abs(out_gath - ref)))

    # 3) fallback path with bf16 streaming (recommended default on v6e/v7x)
    out_bf16 = jax.block_until_ready(
        jax.jit(functools.partial(edge_decoder_forward, force_path="gathered",
                                  compute_dtype=jnp.bfloat16))(
            z_user, z_movie, edge_label_index, params))
    assert jnp.allclose(out_bf16, ref, atol=5e-2, rtol=5e-2), \
        float(jnp.max(jnp.abs(out_bf16 - ref)))

    print("KERNEL_OK")
</pallas_src>

<mosaic_0001>
module attributes {stable_mosaic.version = 11 : i64} {
  func.func @_fused_gather_mlp_kernel(%arg0: i32, %arg1: memref<1x64xi32, #tpu.memory_space<vmem>>, %arg2: memref<1x64xi32, #tpu.memory_space<vmem>>, %arg3: memref<32x16xf32, #tpu.memory_space<vmem>>, %arg4: memref<32x24xf32, #tpu.memory_space<vmem>>, %arg5: memref<32x1xf32, #tpu.memory_space<vmem>>, %arg6: memref<32x1xf32, #tpu.memory_space<vmem>>, %arg7: memref<1xf32, #tpu.memory_space<smem>>, %arg8: memref<1x64xf32, #tpu.memory_space<vmem>>) attributes {dimension_semantics = [#tpu.dimension_semantics<parallel>], iteration_bounds = array<i64: 1>, scalar_prefetch = 0 : i64, scratch_operands = 0 : i64, tpu.core_type = #tpu.core_type<tc>, window_params = [{transform_indices = @transform_0, window_bounds = array<i64: 1, 64>}, {transform_indices = @transform_1, window_bounds = array<i64: 1, 64>}, {pipeline_mode = #tpu.pipeline_mode<synchronous>, transform_indices = @transform_2, window_bounds = array<i64: 32, 16>}, {pipeline_mode = #tpu.pipeline_mode<synchronous>, transform_indices = @transform_3, window_bounds = array<i64: 32, 24>}, {pipeline_mode = #tpu.pipeline_mode<synchronous>, transform_indices = @transform_4, window_bounds = array<i64: 32, 1>}, {pipeline_mode = #tpu.pipeline_mode<synchronous>, transform_indices = @transform_5, window_bounds = array<i64: 32, 1>}, {transform_indices = @transform_6, window_bounds = array<i64: 1>}, {transform_indices = @transform_7, window_bounds = array<i64: 1, 64>}]} {
    %c0 = arith.constant 0 : index
    %c0_0 = arith.constant 0 : index
    %0 = vector.load %arg1[%c0, %c0_0] : memref<1x64xi32, #tpu.memory_space<vmem>>, vector<1x64xi32>
    %1 = tpu.iota {dimensions = array<i32: 0>} : vector<16x64xi32>
    %2 = vector.broadcast %0 : vector<1x64xi32> to vector<16x64xi32>
    %3 = arith.cmpi eq, %2, %1 : vector<16x64xi32>
    %4 = arith.extui %3 : vector<16x64xi1> to vector<16x64xi32>
    %5 = arith.sitofp %4 : vector<16x64xi32> to vector<16x64xf32>
    %c0_1 = arith.constant 0 : index
    %c0_2 = arith.constant 0 : index
    %6 = vector.load %arg2[%c0_1, %c0_2] : memref<1x64xi32, #tpu.memory_space<vmem>>, vector<1x64xi32>
    %7 = tpu.iota {dimensions = array<i32: 0>} : vector<24x64xi32>
    %8 = vector.broadcast %6 : vector<1x64xi32> to vector<24x64xi32>
    %9 = arith.cmpi eq, %8, %7 : vector<24x64xi32>
    %10 = arith.extui %9 : vector<24x64xi1> to vector<24x64xi32>
    %11 = arith.sitofp %10 : vector<24x64xi32> to vector<24x64xf32>
    %c0_3 = arith.constant 0 : index
    %c0_4 = arith.constant 0 : index
    %12 = vector.load %arg3[%c0_3, %c0_4] : memref<32x16xf32, #tpu.memory_space<vmem>>, vector<32x16xf32>
    %cst = arith.constant dense<0.000000e+00> : vector<32x64xf32>
    %13 = tpu.matmul %12, %5, %cst {dimension_numbers = #tpu.dot_dimension_numbers<[1], [0], [0], [1], [0, 0, 1, 1], [], []>} : vector<32x16xf32>, vector<16x64xf32>, vector<32x64xf32> -> vector<32x64xf32>
    %c0_5 = arith.constant 0 : index
    %c0_6 = arith.constant 0 : index
    %14 = vector.load %arg4[%c0_5, %c0_6] : memref<32x24xf32, #tpu.memory_space<vmem>>, vector<32x24xf32>
    %cst_7 = arith.constant dense<0.000000e+00> : vector<32x64xf32>
    %15 = tpu.matmul %14, %11, %cst_7 {dimension_numbers = #tpu.dot_dimension_numbers<[1], [0], [0], [1], [0, 0, 1, 1], [], []>} : vector<32x24xf32>, vector<24x64xf32>, vector<32x64xf32> -> vector<32x64xf32>
    %16 = arith.addf %13, %15 : vector<32x64xf32>
    %c0_8 = arith.constant 0 : index
    %c0_9 = arith.constant 0 : index
    %17 = vector.load %arg5[%c0_8, %c0_9] : memref<32x1xf32, #tpu.memory_space<vmem>>, vector<32x1xf32>
    %18 = vector.broadcast %17 : vector<32x1xf32> to vector<32x64xf32>
    %19 = arith.addf %16, %18 : vector<32x64xf32>
    %cst_10 = arith.constant 0.000000e+00 : f32
    %20 = vector.broadcast %cst_10 : f32 to vector<32x64xf32>
    %21 = arith.maximumf %19, %20 : vector<32x64xf32>
    %c0_11 = arith.constant 0 : index
    %c0_12 = arith.constant 0 : index
    %22 = vector.load %arg6[%c0_11, %c0_12] : memref<32x1xf32, #tpu.memory_space<vmem>>, vector<32x1xf32>
    %23 = vector.broadcast %22 : vector<32x1xf32> to vector<32x64xf32>
    %24 = arith.mulf %21, %23 : vector<32x64xf32>
    %cst_13 = arith.constant dense<0.000000e+00> : vector<64xf32>
    %25 = vector.multi_reduction <add>, %24, %cst_13 [0] : vector<32x64xf32> to vector<64xf32>
    %26 = vector.shape_cast %25 : vector<64xf32> to vector<1x64xf32>
    %c0_14 = arith.constant 0 : index
    %27 = memref.load %arg7[%c0_14] : memref<1xf32, #tpu.memory_space<smem>>
    %28 = vector.broadcast %27 : f32 to vector<1x64xf32>
    %29 = arith.addf %26, %28 : vector<1x64xf32>
    %c0_15 = arith.constant 0 : index
    %c0_16 = arith.constant 0 : index
    %30 = vector.load %arg8[%c0_15, %c0_16] : memref<1x64xf32, #tpu.memory_space<vmem>>, vector<1x64xf32>
    tpu.vector_store %arg8[%c0_15, %c0_16], %29 {strides = array<i32>} : memref<1x64xf32, #tpu.memory_space<vmem>>, vector<1x64xf32>,
    return
  }
  func.func @transform_0(%arg0: i32) -> (i32, i32) {
    %c0_i32 = arith.constant 0 : i32
    %c0_i32_0 = arith.constant 0 : i32
    return %c0_i32, %arg0 : i32, i32
  }
  func.func @transform_1(%arg0: i32) -> (i32, i32) {
    %c0_i32 = arith.constant 0 : i32
    %c0_i32_0 = arith.constant 0 : i32
    return %c0_i32, %arg0 : i32, i32
  }
  func.func @transform_2(%arg0: i32) -> (i32, i32) {
    %c0_i32 = arith.constant 0 : i32
    %c0_i32_0 = arith.constant 0 : i32
    %c0_i32_1 = arith.constant 0 : i32
    return %c0_i32, %c0_i32_0 : i32, i32
  }
  func.func @transform_3(%arg0: i32) -> (i32, i32) {
    %c0_i32 = arith.constant 0 : i32
    %c0_i32_0 = arith.constant 0 : i32
    %c0_i32_1 = arith.constant 0 : i32
    return %c0_i32, %c0_i32_0 : i32, i32
  }
  func.func @transform_4(%arg0: i32) -> (i32, i32) {
    %c0_i32 = arith.constant 0 : i32
    %c0_i32_0 = arith.constant 0 : i32
    %c0_i32_1 = arith.constant 0 : i32
    return %c0_i32, %c0_i32_0 : i32, i32
  }
  func.func @transform_5(%arg0: i32) -> (i32, i32) {
    %c0_i32 = arith.constant 0 : i32
    %c0_i32_0 = arith.constant 0 : i32
    %c0_i32_1 = arith.constant 0 : i32
    return %c0_i32, %c0_i32_0 : i32, i32
  }
  func.func @transform_6(%arg0: i32) -> i32 {
    %c0_i32 = arith.constant 0 : i32
    %c0_i32_0 = arith.constant 0 : i32
    return %c0_i32 : i32
  }
  func.func @transform_7(%arg0: i32) -> (i32, i32) {
    %c0_i32 = arith.constant 0 : i32
    %c0_i32_0 = arith.constant 0 : i32
    return %c0_i32, %arg0 : i32, i32
  }
}

</mosaic_0001>

<llo_original>
// kernel: edge_decoder_forward.1
$region0: #{edge_decoder_forward.1}
  #allocation0 [shape = 'u32[]', space=smem, size = 0x4, offset = 0x4, fixed_abs, tag = 'smem constant byte address 0x4 - core index']
  #allocation1 [shape = 'u32[144,128]{1,0:T(1,128)}', space=vmem, size = 0x12000, scoped, tag = 'internal scratch']
  #allocation2 [shape = 'f32[1]{0:T(128)S(6)}', space=smem, size = 0x200, scoped, tag = 'scoped memory for edge_decoder_forward.1']
  %s0 = inlined_call_operand.vmem [shape: s32[1,64], index: 0, kind: input, shape index: {}]
  %s1 = inlined_call_operand.vmem [shape: s32[1,64], index: 1, kind: input, shape index: {}]
  %s2 = inlined_call_operand.vmem [shape: f32[32,16], index: 2, kind: input, shape index: {}]
  %s3 = inlined_call_operand.vmem [shape: f32[32,24], index: 3, kind: input, shape index: {}]
  %s4 = inlined_call_operand.vmem [shape: f32[32,1], index: 4, kind: input, shape index: {}]
  %s5 = inlined_call_operand.vmem [shape: f32[32,1], index: 5, kind: input, shape index: {}]
  %s6 = inlined_call_operand.<no memory space> [shape: f32[1], index: 6, kind: input, shape index: {}]
  %s7 = inlined_call_operand.hbm [shape: f32[1,64], index: 7, kind: output, shape index: {}]
  %s8 = sld [smem:[#allocation0]]
  $region38: #{edge_decoder_forward.1} parent=0
    _
  %s10 = ssub.s32 1, %s8
  %s11 = scalar_select 0, %s10, %s8
  %12 = sst [smem:[#allocation2]] %s6
  $region1: #{edge_decoder_forward.1} parent=0
    #allocation3 [shape = 'u8[512]{0}', space=vmem, size = 0x400, scoped, tag = 'output window, operand 0, single buffered']
    #allocation4 [shape = 's32[1]{0}', space=sflag, size = 0x4, scoped, tag = 'scoped memory for edge_decoder_forward.1']
    %13 = vsyncpa [#allocation4], 0
    // Predicated region
    $region2: #{edge_decoder_forward.1} parent=1 // pred_check
      _
    $region3: #{edge_decoder_forward.1} parent=1 // pred_check_branch
      %15 = sbr.rel (0) target = $region5
    $region4: #{edge_decoder_forward.1} parent=1 // pred_region
      _
    $region5: #{edge_decoder_forward.1} parent=1 // pred_fallthru
      _
    // Predicated region
    $region6: #{edge_decoder_forward.1} parent=1 // pred_check
      _
    $region7: #{edge_decoder_forward.1} parent=1 // pred_check_branch
      %17 = sbr.rel (0) target = $region9
    $region8: #{edge_decoder_forward.1} parent=1 // pred_region
      _
    $region9: #{edge_decoder_forward.1} parent=1 // pred_fallthru
      _
    // Predicated region
    $region10: #{edge_decoder_forward.1} parent=1 // pred_check
      _
    $region11: #{edge_decoder_forward.1} parent=1 // pred_check_branch
      %19 = sbr.rel (0) target = $region13
    $region12: #{edge_decoder_forward.1} parent=1 // pred_region
      _
    $region13: #{edge_decoder_forward.1} parent=1 // pred_fallthru
      _
    // Predicated region
    $region14: #{edge_decoder_forward.1} parent=1 // pred_check
      _
    $region15: #{edge_decoder_forward.1} parent=1 // pred_check_branch
      %21 = sbr.rel (0) target = $region17
    $region16: #{edge_decoder_forward.1} parent=1 // pred_region
      _
    $region17: #{edge_decoder_forward.1} parent=1 // pred_fallthru
      _
    // Predicated region
    $region18: #{edge_decoder_forward.1} parent=1 // pred_check
      _
    $region19: #{edge_decoder_forward.1} parent=1 // pred_check_branch
      %23 = sbr.rel (0) target = $region21
    $region20: #{edge_decoder_forward.1} parent=1 // pred_region
      _
    $region21: #{edge_decoder_forward.1} parent=1 // pred_fallthru
      _
    // Predicated region
    $region22: #{edge_decoder_forward.1} parent=1 // pred_check
      _
    $region23: #{edge_decoder_forward.1} parent=1 // pred_check_branch
      %25 = sbr.rel (0) target = $region25
    $region24: #{edge_decoder_forward.1} parent=1 // pred_region
      _
    $region25: #{edge_decoder_forward.1} parent=1 // pred_fallthru
      _
    // Predicated region
    $region26: #{edge_decoder_forward.1} parent=1 // pred_check
      _
    $region27: #{edge_decoder_forward.1} parent=1 // pred_check_branch
      %27 = sbr.rel (0) target = $region29
    $region28: #{edge_decoder_forward.1} parent=1 // pred_region
      _
    $region29: #{edge_decoder_forward.1} parent=1 // pred_fallthru
      _
    %v28 = vld [vmem:[%s0] sm:$0x1]
    %v29 = vlaneseq
    %v30 = vshrl.u32 %v29, 7
    %v31 = vadd.s32 %v30, 8
    %v32 = vlaneseq
    %v33 = vshrl.u32 %v32, 7
    %v34 = vsub.s32 0, %v33
    %v35 = vrot.slane %v28, %v34
    %vm36 = vcmp.eq.s32.totalorder %v35, %v30
    %vm37 = vcmp.eq.s32.totalorder %v35, %v31
    %v38 = vsel %vm36, 1, 0
    %v39 = vsel %vm37, 1, 0
    %v40 = vcvt.s32.f32 %v38
    %v41 = vcvt.s32.f32 %v39
    %v42 = vld [vmem:[%s1] sm:$0x1]
    %v43 = vadd.s32 %v30, 16
    %v44 = vlaneseq
    %v45 = vshrl.u32 %v44, 7
    %v46 = vsub.s32 0, %v45
    %v47 = vrot.slane %v42, %v46
    %vm48 = vcmp.eq.s32.totalorder %v47, %v30
    %vm49 = vcmp.eq.s32.totalorder %v47, %v31
    %vm50 = vcmp.eq.s32.totalorder %v47, %v43
    %v51 = vsel %vm48, 1, 0
    %v52 = vsel %vm49, 1, 0
    %v53 = vsel %vm50, 1, 0
    %v54 = vcvt.s32.f32 %v51
    %v55 = vcvt.s32.f32 %v52
    %v56 = vcvt.s32.f32 %v53
    %v57 = vld [vmem:[%s2] sm:$0xff]
    %v58 = vld [vmem:[%s2 + $0x8] sm:$0xff]
    %v59 = vld [vmem:[%s2 + $0x10] sm:$0xff]
    %v60 = vld [vmem:[%s2 + $0x18] sm:$0xff]
    %v61 = vld [vmem:[%s3] sm:$0xff]
    %v62 = vld [vmem:[%s3 + $0x8] sm:$0xff]
    %v63 = vld [vmem:[%s3 + $0x10] sm:$0xff]
    %v64 = vld [vmem:[%s3 + $0x18] sm:$0xff]
    %vm65 = vcmask 195584
    %v67 = vsel %vm65, %v61, 0
    %v70 = vsel %vm65, %v62, 0
    %v73 = vsel %vm65, %v63, 0
    %v76 = vsel %vm65, %v64, 0
    %78 = vmatprep.subr.mxu0 0.0
    %79 = vmatpush1.msra.mxu0 0.0
    %80 = vmatprep.subr.mxu0 0.0
    %81 = vmatpush1.msra.mxu0 0.0
    %82 = vmatprep.subr.mxu0 0.0
    %83 = vmatpush1.msra.mxu0 0.0
    %84 = vmatprep.subr.mxu0 0.0
    %85 = vmatpush1.msra.mxu0 0.0
    %86 = vmatprep.subr.mxu0 0.0
    %87 = vmatpush1.msra.mxu0 0.0
    %88 = vmatprep.subr.mxu0 0.0
    %89 = vmatpush1.msra.mxu0 0.0
    %90 = vmatprep.subr.mxu0 0.0
    %91 = vmatpush1.msra.mxu0 0.0
    %92 = vmatprep.subr.mxu0 0.0
    %93 = vmatpush1.msra.mxu0 0.0
    %94 = vmatprep.subr.mxu0 0.0
    %95 = vmatpush1.msra.mxu0 0.0
    %96 = vmatprep.subr.mxu0 0.0
    %97 = vmatpush1.msra.mxu0 0.0
    %98 = vmatprep.subr.mxu0 0.0
    %99 = vmatpush1.msra.mxu0 0.0
    %100 = vmatprep.subr.mxu0 0.0
    %101 = vmatpush1.msra.mxu0 0.0
    %102 = vmatprep.subr.mxu0 0.0
    %103 = vmatpush1.msra.mxu0 0.0
    %104 = vmatprep.subr.mxu0 0.0
    %105 = vmatpush1.msra.mxu0 %v56
    %106 = vmatprep.subr.mxu0 0.0
    %107 = vmatpush1.msra.mxu0 %v55
    %108 = vmatprep.subr.mxu0 0.0
    %109 = vmatpush1.msra.mxu0 %v54
    %110 = vmatprep.subr.mxu0 0.0
    %111 = vmatpush2.msra.mxu0 0.0
    %112 = vmatprep.subr.mxu0 0.0
    %113 = vmatpush2.msra.mxu0 0.0
    %114 = vmatprep.subr.mxu0 0.0
    %115 = vmatpush2.msra.mxu0 0.0
    %116 = vmatprep.subr.mxu0 0.0
    %117 = vmatpush2.msra.mxu0 0.0
    %118 = vmatprep.subr.mxu0 0.0
    %119 = vmatpush2.msra.mxu0 0.0
    %120 = vmatprep.subr.mxu0 0.0
    %121 = vmatpush2.msra.mxu0 0.0
    %122 = vmatprep.subr.mxu0 0.0
    %123 = vmatpush2.msra.mxu0 0.0
    %124 = vmatprep.subr.mxu0 0.0
    %125 = vmatpush2.msra.mxu0 0.0
    %126 = vmatprep.subr.mxu0 0.0
    %127 = vmatpush2.msra.mxu0 0.0
    %128 = vmatprep.subr.mxu0 0.0
    %129 = vmatpush2.msra.mxu0 0.0
    %130 = vmatprep.subr.mxu0 0.0
    %131 = vmatpush2.msra.mxu0 0.0
    %132 = vmatprep.subr.mxu0 0.0
    %133 = vmatpush2.msra.mxu0 0.0
    %134 = vmatprep.subr.mxu0 0.0
    %135 = vmatpush2.msra.mxu0 0.0
    %136 = vmatprep.subr.mxu0 0.0
    %137 = vmatpush2.msra.mxu0 0.0
    %138 = vmatprep.subr.mxu0 0.0
    %139 = vmatpush2.msra.mxu0 0.0
    %140 = vmatprep.subr.mxu0 0.0
    %141 = vmatpush2.msra.mxu0 0.0
    %142 = vmatprep.mubr.f32.mxu0 0.0
    %143 = vmatmul.mubr.f32.gmra.mxu0 %v67
    %v144 = vpop.f32.mrf.mxu0
    %v145 = vadd.f32 0.0, %v144
    %v146 = vpop.f32.mrf.mxu0
    %147 = vmatprep.mubr.f32.mxu0 0.0
    %148 = vmatmul.mubr.f32.gmra.mxu0 %v70
    %v149 = vpop.f32.mrf.mxu0
    %v150 = vadd.f32 0.0, %v149
    %v151 = vpop.f32.mrf.mxu0
    %152 = vmatprep.mubr.f32.mxu0 0.0
    %153 = vmatmul.mubr.f32.gmra.mxu0 %v73
    %v154 = vpop.f32.mrf.mxu0
    %v155 = vadd.f32 0.0, %v154
    %v156 = vpop.f32.mrf.mxu0
    %157 = vmatprep.mubr.f32.mxu0 0.0
    %158 = vmatmul.mubr.f32.gmra.mxu0 %v76
    %v159 = vpop.f32.mrf.mxu0
    %v160 = vadd.f32 0.0, %v159
    %v161 = vpop.f32.mrf.mxu0
    %162 = vdwg.mxu0
    %vm163 = vcmask 130048
    %v165 = vsel %vm163, %v57, 0
    %v168 = vsel %vm163, %v58, 0
    %v171 = vsel %vm163, %v59, 0
    %v174 = vsel %vm163, %v60, 0
    %176 = vmatprep.subr.mxu0 0.0
    %177 = vmatpush1.msra.mxu0 0.0
    %178 = vmatprep.subr.mxu0 0.0
    %179 = vmatpush1.msra.mxu0 0.0
    %180 = vmatprep.subr.mxu0 0.0
    %181 = vmatpush1.msra.mxu0 0.0
    %182 = vmatprep.subr.mxu0 0.0
    %183 = vmatpush1.msra.mxu0 0.0
    %184 = vmatprep.subr.mxu0 0.0
    %185 = vmatpush1.msra.mxu0 0.0
    %186 = vmatprep.subr.mxu0 0.0
    %187 = vmatpush1.msra.mxu0 0.0
    %188 = vmatprep.subr.mxu0 0.0
    %189 = vmatpush1.msra.mxu0 0.0
    %190 = vmatprep.subr.mxu0 0.0
    %191 = vmatpush1.msra.mxu0 0.0
    %192 = vmatprep.subr.mxu0 0.0
    %193 = vmatpush1.msra.mxu0 0.0
    %194 = vmatprep.subr.mxu0 0.0
    %195 = vmatpush1.msra.mxu0 0.0
    %196 = vmatprep.subr.mxu0 0.0
    %197 = vmatpush1.msra.mxu0 0.0
    %198 = vmatprep.subr.mxu0 0.0
    %199 = vmatpush1.msra.mxu0 0.0
    %200 = vmatprep.subr.mxu0 0.0
    %201 = vmatpush1.msra.mxu0 0.0
    %202 = vmatprep.subr.mxu0 0.0
    %203 = vmatpush1.msra.mxu0 0.0
    %204 = vmatprep.subr.mxu0 0.0
    %205 = vmatpush1.msra.mxu0 %v41
    %206 = vmatprep.subr.mxu0 0.0
    %207 = vmatpush1.msra.mxu0 %v40
    %208 = vmatprep.subr.mxu0 0.0
    %209 = vmatpush2.msra.mxu0 0.0
    %210 = vmatprep.subr.mxu0 0.0
    %211 = vmatpush2.msra.mxu0 0.0
    %212 = vmatprep.subr.mxu0 0.0
    %213 = vmatpush2.msra.mxu0 0.0
    %214 = vmatprep.subr.mxu0 0.0
    %215 = vmatpush2.msra.mxu0 0.0
    %216 = vmatprep.subr.mxu0 0.0
    %217 = vmatpush2.msra.mxu0 0.0
    %218 = vmatprep.subr.mxu0 0.0
    %219 = vmatpush2.msra.mxu0 0.0
    %220 = vmatprep.subr.mxu0 0.0
    %221 = vmatpush2.msra.mxu0 0.0
    %222 = vmatprep.subr.mxu0 0.0
    %223 = vmatpush2.msra.mxu0 0.0
    %224 = vmatprep.subr.mxu0 0.0
    %225 = vmatpush2.msra.mxu0 0.0
    %226 = vmatprep.subr.mxu0 0.0
    %227 = vmatpush2.msra.mxu0 0.0
    %228 = vmatprep.subr.mxu0 0.0
    %229 = vmatpush2.msra.mxu0 0.0
    %230 = vmatprep.subr.mxu0 0.0
    %231 = vmatpush2.msra.mxu0 0.0
    %232 = vmatprep.subr.mxu0 0.0
    %233 = vmatpush2.msra.mxu0 0.0
    %234 = vmatprep.subr.mxu0 0.0
    %235 = vmatpush2.msra.mxu0 0.0
    %236 = vmatprep.subr.mxu0 0.0
    %237 = vmatpush2.msra.mxu0 0.0
    %238 = vmatprep.subr.mxu0 0.0
    %239 = vmatpush2.msra.mxu0 0.0
    %240 = vmatprep.mubr.f32.mxu0 0.0
    %241 = vmatmul.mubr.f32.gmra.mxu0 %v165
    %v242 = vpop.f32.mrf.mxu0
    %v243 = vadd.f32 %v145, %v242
    %v244 = vpop.f32.mrf.mxu0
    %245 = vmatprep.mubr.f32.mxu0 0.0
    %246 = vmatmul.mubr.f32.gmra.mxu0 %v168
    %v247 = vpop.f32.mrf.mxu0
    %v248 = vadd.f32 %v150, %v247
    %v249 = vpop.f32.mrf.mxu0
    %250 = vmatprep.mubr.f32.mxu0 0.0
    %251 = vmatmul.mubr.f32.gmra.mxu0 %v171
    %v252 = vpop.f32.mrf.mxu0
    %v253 = vadd.f32 %v155, %v252
    %v254 = vpop.f32.mrf.mxu0
    %255 = vmatprep.mubr.f32.mxu0 0.0
    %256 = vmatmul.mubr.f32.gmra.mxu0 %v174
    %v257 = vpop.f32.mrf.mxu0
    %v258 = vadd.f32 %v160, %v257
    %v259 = vpop.f32.mrf.mxu0
    %260 = vdwg.mxu0
    %v261 = vld [vmem:[%s4] sm:$0xff]
    %v262 = vld [vmem:[%s4 + $0x8] sm:$0xff]
    %v263 = vld [vmem:[%s4 + $0x10] sm:$0xff]
    %v264 = vld [vmem:[%s4 + $0x18] sm:$0xff]
    %266 = vset.pattern.permute.xlu0 0
    %267 = vperm.xlu0 %266, %v261
    %v268 = vpop.permute.xlu0 %267
    %271 = vset.pattern.permute.xlu0 0
    %272 = vperm.xlu0 %271, %v262
    %v273 = vpop.permute.xlu0 %272
    %276 = vset.pattern.permute.xlu0 0
    %277 = vperm.xlu0 %276, %v263
    %v278 = vpop.permute.xlu0 %277
    %281 = vset.pattern.permute.xlu0 0
    %282 = vperm.xlu0 %281, %v264
    %v283 = vpop.permute.xlu0 %282
    %v285 = vadd.f32 %v243, %v268
    %v286 = vadd.f32 %v248, %v273
    %v287 = vadd.f32 %v253, %v278
    %v288 = vadd.f32 %v258, %v283
    %v289 = vmax.f32 %v285, 0.0
    %v290 = vmax.f32 %v286, 0.0
    %v291 = vmax.f32 %v287, 0.0
    %v292 = vmax.f32 %v288, 0.0
    %v293 = vld [vmem:[%s5] sm:$0xff]
    %v294 = vld [vmem:[%s5 + $0x8] sm:$0xff]
    %v295 = vld [vmem:[%s5 + $0x10] sm:$0xff]
    %v296 = vld [vmem:[%s5 + $0x18] sm:$0xff]
    %298 = vset.pattern.permute.xlu0 0
    %299 = vperm.xlu0 %298, %v293
    %v300 = vpop.permute.xlu0 %299
    %303 = vset.pattern.permute.xlu0 0
    %304 = vperm.xlu0 %303, %v294
    %v305 = vpop.permute.xlu0 %304
    %308 = vset.pattern.permute.xlu0 0
    %309 = vperm.xlu0 %308, %v295
    %v310 = vpop.permute.xlu0 %309
    %313 = vset.pattern.permute.xlu0 0
    %314 = vperm.xlu0 %313, %v296
    %v315 = vpop.permute.xlu0 %314
    %v317 = vmul.f32 %v289, %v300
    %v318 = vmul.f32 %v290, %v305
    %v319 = vmul.f32 %v291, %v310
    %v320 = vmul.f32 %v292, %v315
    %vm321 = vcmask 523264
    %v322 = vsel %vm321, %v317, 0.0
    %v323 = vsel %vm321, %v318, 0.0
    %v324 = vadd.f32 %v322, %v323
    %v325 = vsel %vm321, %v319, 0.0
    %v326 = vadd.f32 %v324, %v325
    %v327 = vsel %vm321, %v320, 0.0
    %v328 = vadd.f32 %v326, %v327
    %v329 = vrot.slane %v328, 4
    %v330 = vadd.f32 %v328, %v329
    %v331 = vrot.slane %v330, 2
    %v332 = vadd.f32 %v330, %v331
    %v333 = vrot.slane %v332, 1
    %v334 = vadd.f32 %v332, %v333
    %s335 = sld [smem:[#allocation2]]
    %v336 = vstv %s335
    %v337 = vadd.f32 %v334, %v336
    %vm338 = vcmask 516096
    %339 = vst.msk [vmem:[#allocation3] sm:$0x1] %vm338, %v337
    // Predicated region
    $region30: #{edge_decoder_forward.1} parent=1 // pred_check
      _
    $region31: #{edge_decoder_forward.1} parent=1 // pred_check_branch
      %341 = sbr.rel (0) target = $region33
    $region32: #{edge_decoder_forward.1} parent=1 // pred_region
      %s343 = ssub.s32 16, 16
      %344 = vsyncadd [#allocation4], %s343
      %s346 = sshll.u32 [#allocation3], 4
      %s347 = int_to_ptr.vmem [resolvable:$true] %s346
      %349 = dma.vmem_to_hbm [thread:$0]  %s347, 16, %s7, [#allocation4]
    $region33: #{edge_decoder_forward.1} parent=1 // pred_fallthru
      _
    // Predicated region
    $region34: #{edge_decoder_forward.1} parent=1 // pred_check
      _
    $region35: #{edge_decoder_forward.1} parent=1 // pred_check_branch
      %351 = sbr.rel (0) target = $region37
    $region36: #{edge_decoder_forward.1} parent=1 // pred_region
      %352 = dma.done [#allocation4], 16
    $region37: #{edge_decoder_forward.1} parent=1 // pred_fallthru
      _
    %353 = vsyncpa [#allocation4], 1

</llo_original>
